<compile_context>
chip_gen: v5e
topology: v5e:2x2
jax: 0.10.0
libtpu: 0.0.40
codegen_flags: <defaults>
</compile_context>

<pallas_src>
import jax
import jax.numpy as jnp
from jax.experimental import pallas as pl
from jax.experimental.pallas import tpu as pltpu

LANE = 128


def _round_up(x, m):
    return ((x + m - 1) // m) * m


def decoder_kernel(z_ref, w1_ref, b1_ref, w2_ref, b2_ref, w3_ref, b3_ref,
                   out_ref):
    # Cast z to the weight dtype so a bf16 parameter set keeps layer 1 on the
    # bf16 MXU path (no silent f32 promotion); accumulation is always f32.
    z = z_ref[...].astype(w1_ref.dtype)
    # Layer 1: Linear(lat, 128-padded 64) + ReLU
    h1 = jnp.dot(z, w1_ref[...], preferred_element_type=jnp.float32)
    h1 = jnp.maximum(h1 + b1_ref[...].astype(jnp.float32), 0.0)
    # Layer 2: Linear(128, 128-padded 96) + ReLU
    h2 = jnp.dot(h1.astype(w2_ref.dtype), w2_ref[...],
                 preferred_element_type=jnp.float32)
    h2 = jnp.maximum(h2 + b2_ref[...].astype(jnp.float32), 0.0)
    # Layer 3: Linear(128, lane-padded out)
    x = jnp.dot(h2.astype(w3_ref.dtype), w3_ref[...],
                preferred_element_type=jnp.float32)
    x = x + b3_ref[...].astype(jnp.float32)
    # Drop lane-padding columns before the store; sigmoid on EUP in f32,
    # single cast at the store.
    od = out_ref.shape[-1]
    if od != x.shape[-1]:
        x = x[:, :od]
    out_ref[...] = jax.nn.sigmoid(x).astype(out_ref.dtype)


def prepare_params(params):
    """One-time zero-padding of hidden widths (64, 96) and the output feature
    dim up to multiples of 128 lanes.  Returns (padded_params, out_dim)."""
    w1, b1, w2, b2, w3, b3 = params
    h1, h2, out_dim = w1.shape[1], w2.shape[1], w3.shape[1]
    h1p, h2p, outp = (_round_up(h1, LANE), _round_up(h2, LANE),
                      _round_up(out_dim, LANE))
    w1p = jnp.pad(w1, ((0, 0), (0, h1p - h1)))
    b1p = jnp.pad(b1, ((0, 0), (0, h1p - h1)))
    w2p = jnp.pad(w2, ((0, h1p - h1), (0, h2p - h2)))
    b2p = jnp.pad(b2, ((0, 0), (0, h2p - h2)))
    w3p = jnp.pad(w3, ((0, h2p - h2), (0, outp - out_dim)))
    b3p = jnp.pad(b3, ((0, 0), (0, outp - out_dim)))
    return (w1p, b1p, w2p, b2p, w3p, b3p), out_dim


def decoder_forward(z, padded_params, out_dim, *, tile_b=2048, out_dtype=None):
    """Fused 3-layer MLP decoder as one Pallas kernel, tiled over batch.

    tile_b: 2048 default (v5e/v6e); use 4096-8192 on v7x.  Clamped so there
    are >= 2 grid steps whenever B allows it (megacore sharding on v7x) and so
    tiny batches use a single small tile.  Ragged batches are handled by
    Pallas' masked edge stores (no wrapper-side pad / slice).
    """
    w1, b1, w2, b2, w3, b3 = padded_params
    B, lat = z.shape
    h1p, h2p, outp = w1.shape[1], w2.shape[1], w3.shape[1]
    out_dtype = z.dtype if out_dtype is None else out_dtype

    # Sublane granularity: 8 for f32, 16 for bf16.
    sub = 16 if z.dtype == jnp.bfloat16 else 8
    two_step_cap = _round_up(max(pl.cdiv(B, 2), sub), sub)
    tile_b = max(sub, min(_round_up(tile_b, sub), two_step_cap))
    grid = (pl.cdiv(B, tile_b),)  # ragged last block -> masked edge stores

    # VMEM budget: double-buffered z / out tiles (lane-padded) + f32
    # temporaries (h1/h2/x) + resident weights, with headroom.  Raises v5e's
    # 16 MiB scoped default when needed; capped well under v7x's 64 MiB.
    lanes = lambda d: _round_up(max(d, LANE), LANE)
    est = (2 * tile_b * lanes(lat) * z.dtype.itemsize
           + 2 * tile_b * lanes(out_dim) * jnp.dtype(out_dtype).itemsize
           + 4 * tile_b * max(h1p, h2p, outp) * 4
           + (w1.size + w2.size + w3.size + b1.size + b2.size + b3.size)
             * w1.dtype.itemsize
           + (2 << 20))
    vmem_limit = int(min(max(est * 3 // 2, 32 << 20), 48 << 20))

    # Constant index_map: weight/bias blocks never change, so they stay
    # resident in VMEM across grid steps (no per-step re-DMA).
    const = lambda shape: pl.BlockSpec(shape, lambda i: (0, 0))

    out = pl.pallas_call(
        decoder_kernel,
        out_shape=jax.ShapeDtypeStruct((B, out_dim), out_dtype),
        grid_spec=pltpu.PrefetchScalarGridSpec(
            num_scalar_prefetch=0,
            grid=grid,
            in_specs=[
                pl.BlockSpec((tile_b, lat), lambda i: (i, 0)),  # z
                const((lat, h1p)),   # w1
                const((1, h1p)),     # b1
                const((h1p, h2p)),   # w2
                const((1, h2p)),     # b2
                const((h2p, outp)),  # w3
                const((1, outp)),    # b3
            ],
            out_specs=pl.BlockSpec((tile_b, out_dim), lambda i: (i, 0)),
        ),
        compiler_params=pltpu.CompilerParams(
            dimension_semantics=("parallel",),
            vmem_limit_bytes=vmem_limit),
    )(z, w1, b1, w2, b2, w3, b3)
    return out


def init_params(key, lat_size, init_size, dtype=jnp.float32):
    """Deterministic parameter init matching nn.Linear's shapes/init bounds.
    Weights stored (in_features, out_features) so the kernel computes z @ W + b."""
    dims = [(lat_size, 64), (64, 96), (96, init_size)]
    params = []
    for fan_in, fan_out in dims:
        key, kw, kb = jax.random.split(key, 3)
        bound = float(fan_in) ** -0.5
        w = jax.random.uniform(kw, (fan_in, fan_out), dtype, -bound, bound)
        b = jax.random.uniform(kb, (1, fan_out), dtype, -bound, bound)
        params += [w, b]
    return params


def reference_forward(z, params):
    w1, b1, w2, b2, w3, b3 = params
    h = jnp.maximum(z @ w1 + b1, 0.0)
    h = jnp.maximum(h @ w2 + b2, 0.0)
    return jax.nn.sigmoid(h @ w3 + b3)


if __name__ == "__main__":
    lat_size = 32      # latent dim
    init_size = 128    # decoder output dim

    key = jax.random.PRNGKey(0)
    kz1, kz2, kz3, kp = jax.random.split(key, 4)
    params = init_params(kp, lat_size, init_size)
    padded_params, out_dim = prepare_params(params)

    # f32, even batch.
    z = jax.random.normal(kz1, (8, lat_size), jnp.float32)
    out = jax.block_until_ready(decoder_forward(z, padded_params, out_dim))
    ref = reference_forward(z, params)
    assert out.shape == (8, init_size)
    assert jnp.allclose(out, ref, atol=1e-5, rtol=1e-5)

    # f32, ragged batch (exercises the masked-edge-store path; no pad/slice).
    z2 = jax.random.normal(kz2, (12, lat_size), jnp.float32)
    out2 = jax.block_until_ready(decoder_forward(z2, padded_params, out_dim))
    ref2 = reference_forward(z2, params)
    assert out2.shape == (12, init_size)
    assert jnp.allclose(out2, ref2, atol=1e-5, rtol=1e-5)

    # bf16 data path (halves input DMA + output writeback); looser tolerance.
    params_bf16 = tuple(p.astype(jnp.bfloat16) for p in padded_params)
    z3 = jax.random.normal(kz3, (16, lat_size), jnp.float32)
    out3 = jax.block_until_ready(
        decoder_forward(z3.astype(jnp.bfloat16), params_bf16, out_dim,
                        out_dtype=jnp.bfloat16))
    ref3 = reference_forward(z3, params)
    assert out3.shape == (16, init_size)
    assert jnp.allclose(out3.astype(jnp.float32), ref3, atol=3e-2, rtol=3e-2)

    print("KERNEL_OK")
</pallas_src>

<mosaic_0001>
module attributes {stable_mosaic.version = 11 : i64} {
  func.func @decoder_kernel(%arg0: i32, %arg1: memref<8x32xf32, #tpu.memory_space<vmem>>, %arg2: memref<32x128xf32, #tpu.memory_space<vmem>>, %arg3: memref<1x128xf32, #tpu.memory_space<vmem>>, %arg4: memref<128x128xf32, #tpu.memory_space<vmem>>, %arg5: memref<1x128xf32, #tpu.memory_space<vmem>>, %arg6: memref<128x128xf32, #tpu.memory_space<vmem>>, %arg7: memref<1x128xf32, #tpu.memory_space<vmem>>, %arg8: memref<8x128xf32, #tpu.memory_space<vmem>>) attributes {dimension_semantics = [#tpu.dimension_semantics<parallel>], iteration_bounds = array<i64: 1>, scalar_prefetch = 0 : i64, scratch_operands = 0 : i64, tpu.core_type = #tpu.core_type<tc>, window_params = [{transform_indices = @transform_0, window_bounds = array<i64: 8, 32>}, {pipeline_mode = #tpu.pipeline_mode<synchronous>, transform_indices = @transform_1, window_bounds = array<i64: 32, 128>}, {pipeline_mode = #tpu.pipeline_mode<synchronous>, transform_indices = @transform_2, window_bounds = array<i64: 1, 128>}, {pipeline_mode = #tpu.pipeline_mode<synchronous>, transform_indices = @transform_3, window_bounds = array<i64: 128, 128>}, {pipeline_mode = #tpu.pipeline_mode<synchronous>, transform_indices = @transform_4, window_bounds = array<i64: 1, 128>}, {pipeline_mode = #tpu.pipeline_mode<synchronous>, transform_indices = @transform_5, window_bounds = array<i64: 128, 128>}, {pipeline_mode = #tpu.pipeline_mode<synchronous>, transform_indices = @transform_6, window_bounds = array<i64: 1, 128>}, {transform_indices = @transform_7, window_bounds = array<i64: 8, 128>}]} {
    %c0 = arith.constant 0 : index
    %c0_0 = arith.constant 0 : index
    %0 = vector.load %arg1[%c0, %c0_0] : memref<8x32xf32, #tpu.memory_space<vmem>>, vector<8x32xf32>
    %c0_1 = arith.constant 0 : index
    %c0_2 = arith.constant 0 : index
    %1 = vector.load %arg2[%c0_1, %c0_2] : memref<32x128xf32, #tpu.memory_space<vmem>>, vector<32x128xf32>
    %cst = arith.constant dense<0.000000e+00> : vector<8x128xf32>
    %2 = tpu.matmul %0, %1, %cst {dimension_numbers = #tpu.dot_dimension_numbers<[1], [0], [0], [1], [0, 0, 1, 1], [], []>} : vector<8x32xf32>, vector<32x128xf32>, vector<8x128xf32> -> vector<8x128xf32>
    %c0_3 = arith.constant 0 : index
    %c0_4 = arith.constant 0 : index
    %3 = vector.load %arg3[%c0_3, %c0_4] : memref<1x128xf32, #tpu.memory_space<vmem>>, vector<1x128xf32>
    %4 = vector.broadcast %3 : vector<1x128xf32> to vector<8x128xf32>
    %5 = arith.addf %2, %4 : vector<8x128xf32>
    %cst_5 = arith.constant 0.000000e+00 : f32
    %6 = vector.broadcast %cst_5 : f32 to vector<8x128xf32>
    %7 = arith.maximumf %5, %6 : vector<8x128xf32>
    %c0_6 = arith.constant 0 : index
    %c0_7 = arith.constant 0 : index
    %8 = vector.load %arg4[%c0_6, %c0_7] : memref<128x128xf32, #tpu.memory_space<vmem>>, vector<128x128xf32>
    %cst_8 = arith.constant dense<0.000000e+00> : vector<8x128xf32>
    %9 = tpu.matmul %7, %8, %cst_8 {dimension_numbers = #tpu.dot_dimension_numbers<[1], [0], [0], [1], [0, 0, 1, 1], [], []>} : vector<8x128xf32>, vector<128x128xf32>, vector<8x128xf32> -> vector<8x128xf32>
    %c0_9 = arith.constant 0 : index
    %c0_10 = arith.constant 0 : index
    %10 = vector.load %arg5[%c0_9, %c0_10] : memref<1x128xf32, #tpu.memory_space<vmem>>, vector<1x128xf32>
    %11 = vector.broadcast %10 : vector<1x128xf32> to vector<8x128xf32>
    %12 = arith.addf %9, %11 : vector<8x128xf32>
    %cst_11 = arith.constant 0.000000e+00 : f32
    %13 = vector.broadcast %cst_11 : f32 to vector<8x128xf32>
    %14 = arith.maximumf %12, %13 : vector<8x128xf32>
    %c0_12 = arith.constant 0 : index
    %c0_13 = arith.constant 0 : index
    %15 = vector.load %arg6[%c0_12, %c0_13] : memref<128x128xf32, #tpu.memory_space<vmem>>, vector<128x128xf32>
    %cst_14 = arith.constant dense<0.000000e+00> : vector<8x128xf32>
    %16 = tpu.matmul %14, %15, %cst_14 {dimension_numbers = #tpu.dot_dimension_numbers<[1], [0], [0], [1], [0, 0, 1, 1], [], []>} : vector<8x128xf32>, vector<128x128xf32>, vector<8x128xf32> -> vector<8x128xf32>
    %c0_15 = arith.constant 0 : index
    %c0_16 = arith.constant 0 : index
    %17 = vector.load %arg7[%c0_15, %c0_16] : memref<1x128xf32, #tpu.memory_space<vmem>>, vector<1x128xf32>
    %18 = vector.broadcast %17 : vector<1x128xf32> to vector<8x128xf32>
    %19 = arith.addf %16, %18 : vector<8x128xf32>
    %20 = arith.negf %19 : vector<8x128xf32>
    %21 = math.exp %20 : vector<8x128xf32>
    %cst_17 = arith.constant 1.000000e+00 : f32
    %22 = vector.broadcast %cst_17 : f32 to vector<8x128xf32>
    %23 = arith.addf %22, %21 : vector<8x128xf32>
    %24 = arith.divf %22, %23 : vector<8x128xf32>
    %c0_18 = arith.constant 0 : index
    %c0_19 = arith.constant 0 : index
    %25 = vector.load %arg8[%c0_18, %c0_19] : memref<8x128xf32, #tpu.memory_space<vmem>>, vector<8x128xf32>
    tpu.vector_store %arg8[%c0_18, %c0_19], %24 {strides = array<i32>} : memref<8x128xf32, #tpu.memory_space<vmem>>, vector<8x128xf32>,
    return
  }
  func.func @transform_0(%arg0: i32) -> (i32, i32) {
    %c0_i32 = arith.constant 0 : i32
    %c0_i32_0 = arith.constant 0 : i32
    return %arg0, %c0_i32 : i32, i32
  }
  func.func @transform_1(%arg0: i32) -> (i32, i32) {
    %c0_i32 = arith.constant 0 : i32
    %c0_i32_0 = arith.constant 0 : i32
    %c0_i32_1 = arith.constant 0 : i32
    return %c0_i32, %c0_i32_0 : i32, i32
  }
  func.func @transform_2(%arg0: i32) -> (i32, i32) {
    %c0_i32 = arith.constant 0 : i32
    %c0_i32_0 = arith.constant 0 : i32
    %c0_i32_1 = arith.constant 0 : i32
    return %c0_i32, %c0_i32_0 : i32, i32
  }
  func.func @transform_3(%arg0: i32) -> (i32, i32) {
    %c0_i32 = arith.constant 0 : i32
    %c0_i32_0 = arith.constant 0 : i32
    %c0_i32_1 = arith.constant 0 : i32
    return %c0_i32, %c0_i32_0 : i32, i32
  }
  func.func @transform_4(%arg0: i32) -> (i32, i32) {
    %c0_i32 = arith.constant 0 : i32
    %c0_i32_0 = arith.constant 0 : i32
    %c0_i32_1 = arith.constant 0 : i32
    return %c0_i32, %c0_i32_0 : i32, i32
  }
  func.func @transform_5(%arg0: i32) -> (i32, i32) {
    %c0_i32 = arith.constant 0 : i32
    %c0_i32_0 = arith.constant 0 : i32
    %c0_i32_1 = arith.constant 0 : i32
    return %c0_i32, %c0_i32_0 : i32, i32
  }
  func.func @transform_6(%arg0: i32) -> (i32, i32) {
    %c0_i32 = arith.constant 0 : i32
    %c0_i32_0 = arith.constant 0 : i32
    %c0_i32_1 = arith.constant 0 : i32
    return %c0_i32, %c0_i32_0 : i32, i32
  }
  func.func @transform_7(%arg0: i32) -> (i32, i32) {
    %c0_i32 = arith.constant 0 : i32
    %c0_i32_0 = arith.constant 0 : i32
    return %arg0, %c0_i32 : i32, i32
  }
}

</mosaic_0001>

<llo_original>
// kernel: tpu_custom_call.1
$region0: #{tpu_custom_call.1}
  #allocation0 [shape = 'u32[]', space=smem, size = 0x4, offset = 0x4, fixed_abs, tag = 'smem constant byte address 0x4 - core index']
  #allocation1 [shape = 'u32[72,128]{1,0:T(1,128)}', space=vmem, size = 0x9000, scoped, tag = 'internal scratch']
  %s0 = inlined_call_operand.hbm [shape: f32[8,32], index: 0, kind: input, shape index: {}]
  %s1 = inlined_call_operand.hbm [shape: f32[32,128], index: 1, kind: input, shape index: {}]
  %s2 = inlined_call_operand.vmem [shape: f32[1,128], index: 2, kind: input, shape index: {}]
  %s3 = inlined_call_operand.hbm [shape: f32[128,128], index: 3, kind: input, shape index: {}]
  %s4 = inlined_call_operand.vmem [shape: f32[1,128], index: 4, kind: input, shape index: {}]
  %s5 = inlined_call_operand.hbm [shape: f32[128,128], index: 5, kind: input, shape index: {}]
  %s6 = inlined_call_operand.vmem [shape: f32[1,128], index: 6, kind: input, shape index: {}]
  %s7 = inlined_call_operand.hbm [shape: f32[8,128], index: 7, kind: output, shape index: {}]
  %s8 = sld [smem:[#allocation0]]
  $region54: #{tpu_custom_call.1} parent=0
    _
  %s10 = ssub.s32 1, %s8
  %s11 = scalar_select 0, %s10, %s8
  $region1: #{tpu_custom_call.1} parent=0
    #allocation2 [shape = 'u8[4096]{0}', space=vmem, size = 0x1000, scoped, tag = 'input window, operand 0, single buffered']
    #allocation3 [shape = 's32[1]{0}', space=sflag, size = 0x4, scoped, tag = 'scoped memory for tpu_custom_call.1']
    #allocation4 [shape = 's32[1]{0}', space=sflag, size = 0x4, scoped, tag = 'scoped memory for tpu_custom_call.1']
    #allocation5 [shape = 'u8[16384]{0}', space=vmem, size = 0x4000, scoped, tag = 'input window, operand 1, single buffered']
    #allocation6 [shape = 's32[1]{0}', space=sflag, size = 0x4, scoped, tag = 'scoped memory for tpu_custom_call.1']
    #allocation7 [shape = 'u8[65536]{0}', space=vmem, size = 0x10000, scoped, tag = 'input window, operand 3, single buffered']
    #allocation8 [shape = 'u8[65536]{0}', space=vmem, size = 0x10000, scoped, tag = 'input window, operand 5, single buffered']
    #allocation9 [shape = 's32[1]{0}', space=sflag, size = 0x4, scoped, tag = 'scoped memory for tpu_custom_call.1']
    #allocation10 [shape = 'u8[4096]{0}', space=vmem, size = 0x1000, scoped, tag = 'output window, operand 0, single buffered']
    %12 = vsyncpa [#allocation3], 0
    %13 = vsyncpa [#allocation6], 0
    %14 = vsyncpa [#allocation9], 0
    %15 = vsyncpa [#allocation4], 0
    // Predicated region
    $region2: #{tpu_custom_call.1} parent=1 // pred_check
      _
    $region3: #{tpu_custom_call.1} parent=1 // pred_check_branch
      %17 = sbr.rel (0) target = $region5
    $region4: #{tpu_custom_call.1} parent=1 // pred_region
      %19 = vsyncadd [#allocation3], 0
      %s21 = sshll.u32 %s0, 4
      %s22 = int_to_ptr.hbm [resolvable:$true] %s21
      %s23 = sshll.u32 [#allocation2], 4
      %s24 = int_to_ptr.vmem [resolvable:$true] %s23
      %26 = dma.hbm_to_vmem [thread:$0]  %s22, 128, %s24, [#allocation3]
    $region5: #{tpu_custom_call.1} parent=1 // pred_fallthru
      _
    // Predicated region
    $region6: #{tpu_custom_call.1} parent=1 // pred_check
      _
    $region7: #{tpu_custom_call.1} parent=1 // pred_check_branch
      %28 = sbr.rel (0) target = $region9
    $region8: #{tpu_custom_call.1} parent=1 // pred_region
      %30 = vsyncadd [#allocation6], 0
      %s31 = sshll.u32 %s1, 4
      %s32 = int_to_ptr.hbm [resolvable:$true] %s31
      %s33 = sshll.u32 [#allocation5], 4
      %s34 = int_to_ptr.vmem [resolvable:$true] %s33
      %39 = dma.hbm_to_vmem [thread:$0]  %s32, 512, %s34, [#allocation6], 128, 128, 8
    $region9: #{tpu_custom_call.1} parent=1 // pred_fallthru
      _
    // Predicated region
    $region10: #{tpu_custom_call.1} parent=1 // pred_check
      _
    $region11: #{tpu_custom_call.1} parent=1 // pred_check_branch
      %41 = sbr.rel (0) target = $region13
    $region12: #{tpu_custom_call.1} parent=1 // pred_region
      _
    $region13: #{tpu_custom_call.1} parent=1 // pred_fallthru
      _
    // Predicated region
    $region14: #{tpu_custom_call.1} parent=1 // pred_check
      _
    $region15: #{tpu_custom_call.1} parent=1 // pred_check_branch
      %43 = sbr.rel (0) target = $region17
    $region16: #{tpu_custom_call.1} parent=1 // pred_region
      %45 = vsyncadd [#allocation6], 0
      %s46 = sshll.u32 %s3, 4
      %s47 = int_to_ptr.hbm [resolvable:$true] %s46
      %s48 = sshll.u32 [#allocation7], 4
      %s49 = int_to_ptr.vmem [resolvable:$true] %s48
      %54 = dma.hbm_to_vmem [thread:$0]  %s47, 2048, %s49, [#allocation6], 128, 128, 8
    $region17: #{tpu_custom_call.1} parent=1 // pred_fallthru
      _
    // Predicated region
    $region18: #{tpu_custom_call.1} parent=1 // pred_check
      _
    $region19: #{tpu_custom_call.1} parent=1 // pred_check_branch
      %56 = sbr.rel (0) target = $region21
    $region20: #{tpu_custom_call.1} parent=1 // pred_region
      _
    $region21: #{tpu_custom_call.1} parent=1 // pred_fallthru
      _
    // Predicated region
    $region22: #{tpu_custom_call.1} parent=1 // pred_check
      _
    $region23: #{tpu_custom_call.1} parent=1 // pred_check_branch
      %58 = sbr.rel (0) target = $region25
    $region24: #{tpu_custom_call.1} parent=1 // pred_region
      %60 = vsyncadd [#allocation9], 0
      %s61 = sshll.u32 %s5, 4
      %s62 = int_to_ptr.hbm [resolvable:$true] %s61
      %s63 = sshll.u32 [#allocation8], 4
      %s64 = int_to_ptr.vmem [resolvable:$true] %s63
      %69 = dma.hbm_to_vmem [thread:$0]  %s62, 2048, %s64, [#allocation9], 128, 128, 8
    $region25: #{tpu_custom_call.1} parent=1 // pred_fallthru
      _
    // Predicated region
    $region26: #{tpu_custom_call.1} parent=1 // pred_check
      _
    $region27: #{tpu_custom_call.1} parent=1 // pred_check_branch
      %71 = sbr.rel (0) target = $region29
    $region28: #{tpu_custom_call.1} parent=1 // pred_region
      _
    $region29: #{tpu_custom_call.1} parent=1 // pred_fallthru
      _
    // Predicated region
    $region30: #{tpu_custom_call.1} parent=1 // pred_check
      _
    $region31: #{tpu_custom_call.1} parent=1 // pred_check_branch
      %73 = sbr.rel (0) target = $region33
    $region32: #{tpu_custom_call.1} parent=1 // pred_region
      %75 = dma.done [#allocation3], 128
    $region33: #{tpu_custom_call.1} parent=1 // pred_fallthru
      _
    // Predicated region
    $region34: #{tpu_custom_call.1} parent=1 // pred_check
      _
    $region35: #{tpu_custom_call.1} parent=1 // pred_check_branch
      %77 = sbr.rel (0) target = $region37
    $region36: #{tpu_custom_call.1} parent=1 // pred_region
      %79 = dma.done [#allocation6], 512
    $region37: #{tpu_custom_call.1} parent=1 // pred_fallthru
      _
    // Predicated region
    $region38: #{tpu_custom_call.1} parent=1 // pred_check
      _
    $region39: #{tpu_custom_call.1} parent=1 // pred_check_branch
      %81 = sbr.rel (0) target = $region41
    $region40: #{tpu_custom_call.1} parent=1 // pred_region
      %83 = dma.done [#allocation6], 2048
    $region41: #{tpu_custom_call.1} parent=1 // pred_fallthru
      _
    // Predicated region
    $region42: #{tpu_custom_call.1} parent=1 // pred_check
      _
    $region43: #{tpu_custom_call.1} parent=1 // pred_check_branch
      %85 = sbr.rel (0) target = $region45
    $region44: #{tpu_custom_call.1} parent=1 // pred_region
      %87 = dma.done [#allocation9], 2048
    $region45: #{tpu_custom_call.1} parent=1 // pred_fallthru
      _
    %v88 = vld [vmem:[#allocation2] sm:$0xff]
    %v89 = vld [vmem:[#allocation5] sm:$0xff]
    %v90 = vld [vmem:[#allocation5 + $0x8] sm:$0xff]
    %v91 = vld [vmem:[#allocation5 + $0x10] sm:$0xff]
    %v92 = vld [vmem:[#allocation5 + $0x18] sm:$0xff]
    %v93 = vld [vmem:[%s2] sm:$0x1]
    %v95 = vperm.slane %v93, 0
    %vm97 = vcmask 261120
    %v99 = vsel %vm97, %v88, 0
    %101 = vmatpush.msra.mxu0 0.0
    %102 = vmatpush.msra.mxu0 0.0
    %103 = vmatpush.msra.mxu0 0.0
    %104 = vmatpush.msra.mxu0 0.0
    %105 = vmatpush.msra.mxu0 0.0
    %106 = vmatpush.msra.mxu0 0.0
    %107 = vmatpush.msra.mxu0 0.0
    %108 = vmatpush.msra.mxu0 0.0
    %109 = vmatpush.msra.mxu0 0.0
    %110 = vmatpush.msra.mxu0 0.0
    %111 = vmatpush.msra.mxu0 0.0
    %112 = vmatpush.msra.mxu0 0.0
    %113 = vmatpush.msra.mxu0 %v92
    %114 = vmatpush.msra.mxu0 %v91
    %115 = vmatpush.msra.mxu0 %v90
    %116 = vmatpush.msra.mxu0 %v89
    %117 = vmatmul.f32.gmra.mxu0 %v99
    %v118 = vpop.f32.mrf.mxu0
    %v119 = vadd.f32 %v95, %v118
    %120 = vdwg.mxu0
    %v121 = vmax.f32 %v119, 0.0
    %v122 = vld [vmem:[#allocation7] sm:$0xff]
    %v123 = vld [vmem:[#allocation7 + $0x8] sm:$0xff]
    %v124 = vld [vmem:[#allocation7 + $0x10] sm:$0xff]
    %v125 = vld [vmem:[#allocation7 + $0x18] sm:$0xff]
    %v126 = vld [vmem:[#allocation7 + $0x20] sm:$0xff]
    %v127 = vld [vmem:[#allocation7 + $0x28] sm:$0xff]
    %v128 = vld [vmem:[#allocation7 + $0x30] sm:$0xff]
    %v129 = vld [vmem:[#allocation7 + $0x38] sm:$0xff]
    %v130 = vld [vmem:[#allocation7 + $0x40] sm:$0xff]
    %v131 = vld [vmem:[#allocation7 + $0x48] sm:$0xff]
    %v132 = vld [vmem:[#allocation7 + $0x50] sm:$0xff]
    %v133 = vld [vmem:[#allocation7 + $0x58] sm:$0xff]
    %v134 = vld [vmem:[#allocation7 + $0x60] sm:$0xff]
    %v135 = vld [vmem:[#allocation7 + $0x68] sm:$0xff]
    %v136 = vld [vmem:[#allocation7 + $0x70] sm:$0xff]
    %v137 = vld [vmem:[#allocation7 + $0x78] sm:$0xff]
    %v138 = vld [vmem:[%s4] sm:$0x1]
    %v140 = vperm.slane %v138, 0
    %142 = vmatpush.msra.mxu0 %v137
    %143 = vmatpush.msra.mxu0 %v136
    %144 = vmatpush.msra.mxu0 %v135
    %145 = vmatpush.msra.mxu0 %v134
    %146 = vmatpush.msra.mxu0 %v133
    %147 = vmatpush.msra.mxu0 %v132
    %148 = vmatpush.msra.mxu0 %v131
    %149 = vmatpush.msra.mxu0 %v130
    %150 = vmatpush.msra.mxu0 %v129
    %151 = vmatpush.msra.mxu0 %v128
    %152 = vmatpush.msra.mxu0 %v127
    %153 = vmatpush.msra.mxu0 %v126
    %154 = vmatpush.msra.mxu0 %v125
    %155 = vmatpush.msra.mxu0 %v124
    %156 = vmatpush.msra.mxu0 %v123
    %157 = vmatpush.msra.mxu0 %v122
    %158 = vmatmul.f32.gmra.mxu0 %v121
    %v159 = vpop.f32.mrf.mxu0
    %v160 = vadd.f32 %v140, %v159
    %161 = vdwg.mxu0
    %v162 = vmax.f32 %v160, 0.0
    %v163 = vld [vmem:[#allocation8] sm:$0xff]
    %v164 = vld [vmem:[#allocation8 + $0x8] sm:$0xff]
    %v165 = vld [vmem:[#allocation8 + $0x10] sm:$0xff]
    %v166 = vld [vmem:[#allocation8 + $0x18] sm:$0xff]
    %v167 = vld [vmem:[#allocation8 + $0x20] sm:$0xff]
    %v168 = vld [vmem:[#allocation8 + $0x28] sm:$0xff]
    %v169 = vld [vmem:[#allocation8 + $0x30] sm:$0xff]
    %v170 = vld [vmem:[#allocation8 + $0x38] sm:$0xff]
    %v171 = vld [vmem:[#allocation8 + $0x40] sm:$0xff]
    %v172 = vld [vmem:[#allocation8 + $0x48] sm:$0xff]
    %v173 = vld [vmem:[#allocation8 + $0x50] sm:$0xff]
    %v174 = vld [vmem:[#allocation8 + $0x58] sm:$0xff]
    %v175 = vld [vmem:[#allocation8 + $0x60] sm:$0xff]
    %v176 = vld [vmem:[#allocation8 + $0x68] sm:$0xff]
    %v177 = vld [vmem:[#allocation8 + $0x70] sm:$0xff]
    %v178 = vld [vmem:[#allocation8 + $0x78] sm:$0xff]
    %v179 = vld [vmem:[%s6] sm:$0x1]
    %v181 = vperm.slane %v179, 0
    %183 = vmatpush.msra.mxu0 %v178
    %184 = vmatpush.msra.mxu0 %v177
    %185 = vmatpush.msra.mxu0 %v176
    %186 = vmatpush.msra.mxu0 %v175
    %187 = vmatpush.msra.mxu0 %v174
    %188 = vmatpush.msra.mxu0 %v173
    %189 = vmatpush.msra.mxu0 %v172
    %190 = vmatpush.msra.mxu0 %v171
    %191 = vmatpush.msra.mxu0 %v170
    %192 = vmatpush.msra.mxu0 %v169
    %193 = vmatpush.msra.mxu0 %v168
    %194 = vmatpush.msra.mxu0 %v167
    %195 = vmatpush.msra.mxu0 %v166
    %196 = vmatpush.msra.mxu0 %v165
    %197 = vmatpush.msra.mxu0 %v164
    %198 = vmatpush.msra.mxu0 %v163
    %199 = vmatmul.f32.gmra.mxu0 %v162
    %v200 = vpop.f32.mrf.mxu0
    %v201 = vadd.f32 %v181, %v200
    %202 = vdwg.mxu0
    %v203 = vxor.u32 %v201, 2147483648
    %v204 = vmul.f32 %v203, 1.442695
    %v205 = vpow.pop %v204
    %v206 = vadd.f32 %v205, 1.0
    %v207 = vrcp.pop %v206
    %v208 = vmul.f32 %v206, %v207
    %v209 = vsub.f32 1.0, %v208
    %v210 = vmul.f32 %v207, %v209
    %v211 = vadd.f32 %v207, %v210
    %vm212 = vweird.f32 %v206
    %vm213 = vweird.f32 %v207
    %vm214 = vmor %vm212, %vm213
    %v215 = vsel %vm214, %v207, %v211
    %v216 = vand.u32 2147483647, %v206
    %vm217 = vcmp.eq.f32.partialorder %v216, 8.507059e+37
    %v218 = vand.u32 %v206, 2147483648
    %v219 = vor.u32 1.1754944e-38, %v218
    %v220 = vsel %vm217, %v219, %v215
    %v221 = vmul.f32 1.0, %v220
    %222 = vst [vmem:[#allocation10] sm:$0xff] %v221
    // Predicated region
    $region46: #{tpu_custom_call.1} parent=1 // pred_check
      _
    $region47: #{tpu_custom_call.1} parent=1 // pred_check_branch
      %224 = sbr.rel (0) target = $region49
    $region48: #{tpu_custom_call.1} parent=1 // pred_region
      %226 = vsyncadd [#allocation4], 0
      %s228 = sshll.u32 [#allocation10], 4
      %s229 = int_to_ptr.vmem [resolvable:$true] %s228
      %s230 = sshll.u32 %s7, 4
      %s231 = int_to_ptr.hbm [resolvable:$true] %s230
      %233 = dma.vmem_to_hbm [thread:$0]  %s229, 128, %s231, [#allocation4]
    $region49: #{tpu_custom_call.1} parent=1 // pred_fallthru
      _
    // Predicated region
    $region50: #{tpu_custom_call.1} parent=1 // pred_check
      _
    $region51: #{tpu_custom_call.1} parent=1 // pred_check_branch
      %235 = sbr.rel (0) target = $region53
    $region52: #{tpu_custom_call.1} parent=1 // pred_region
      %237 = dma.done [#allocation4], 128
    $region53: #{tpu_custom_call.1} parent=1 // pred_fallthru
      _
    %238 = vsyncpa [#allocation3], 1
    %239 = vsyncpa [#allocation6], 1
    %240 = vsyncpa [#allocation9], 1
    %241 = vsyncpa [#allocation4], 1

</llo_original>
